<compile_context>
chip_gen: v5e
topology: v5e:2x2
jax: 0.10.0
libtpu: 0.0.40
codegen_flags: <defaults>
</compile_context>

<pallas_src>
import functools

import jax
import jax.numpy as jnp
from jax import lax
from jax.experimental import pallas as pl
from jax.experimental.pallas import tpu as pltpu

IGNORE_INDEX = 255
LANES = 128


def _seg_ce_kernel(pred_ref, lab_ref, out_ref, acc_ref, *, hw_rows):
    """One (batch, tile) step: accumulate per-lane class loss sums & counts.

    pred_ref: (C, R, 128) logits tile (one batch element, R*128 pixels)
    lab_ref : (R, 128) integer labels tile
    out_ref : (1, 2, C, 128) per-lane partials (written only on the last tile)
    acc_ref : (2, C, R, 128) f32 VMEM accumulator (row 0: loss sums, 1: counts)
    """
    t = pl.program_id(1)
    num_t = pl.num_programs(1)
    c, r, _ = pred_ref.shape

    @pl.when(t == 0)
    def _():
        acc_ref[...] = jnp.zeros_like(acc_ref)

    logits = pred_ref[...].astype(jnp.float32)        # (C, R, 128)
    labels = lab_ref[...].astype(jnp.int32)           # (R, 128)

    if c == 2:
        # Two-class closed form: 1 exp + 1 log per pixel on the EUP.
        x0, x1 = logits[0], logits[1]
        lse = jnp.maximum(x0, x1) + jnp.log(1.0 + jnp.exp(-jnp.abs(x0 - x1)))
        picked = jnp.where(labels == 1, x1, x0)
    else:
        m = jnp.max(logits, axis=0)
        lse = m + jnp.log(jnp.sum(jnp.exp(logits - m), axis=0))
        picked = logits[0]
        for cc in range(1, c):
            picked = jnp.where(labels == cc, logits[cc], picked)
    loss = lse - picked                                # (R, 128) per-pixel NLL

    # Tail mask only when the last tile overhangs the pixel rows (static check).
    if hw_rows % r != 0:
        row = lax.broadcasted_iota(jnp.int32, (r, LANES), 0)
        in_bounds = (t * r + row) < hw_rows
    else:
        in_bounds = None

    for cc in range(c):
        sel = labels == cc       # ignore_index=255 never matches (255 >= num_cls)
        if in_bounds is not None:
            sel = jnp.logical_and(sel, in_bounds)
        acc_ref[0, cc] += jnp.where(sel, loss, 0.0)    # per-lane loss sums
        acc_ref[1, cc] += sel.astype(jnp.float32)      # per-lane valid counts

    # Epilogue: collapse only the sublane (row) axis; the cheap cross-lane
    # reduction of the tiny (2, C, 128) result happens in plain JAX outside.
    @pl.when(t == num_t - 1)
    def _():
        out_ref[...] = jnp.sum(acc_ref[...], axis=2)[None]


@functools.partial(jax.jit,
                   static_argnames=("num_cls", "fg_idx", "loss_type", "block_rows"))
def seg_loss(prediction, target_seg, num_cls=2, fg_idx=1, loss_type="wt_ce",
             block_rows=512):
    """Forward of SegLoss (default 'wt_ce'; plain 'ce' also supported)."""
    if loss_type not in ("wt_ce", "ce"):
        # TODO(synk): 'wt_dc'/'dc' (weighted dice) branches are not translated here.
        raise NotImplementedError(f"loss_type={loss_type!r} not implemented")

    n, c, h, w = prediction.shape
    assert c == num_cls
    hw = h * w

    pred = prediction.reshape(n, c, hw)      # free view of NCHW (no transpose)
    lab = target_seg.reshape(n, hw)          # keep caller dtype; widened in-kernel
    if hw % LANES != 0:
        # Rare fallback (extra copy): pad the pixel axis up to a lane multiple.
        pad = (-hw) % LANES
        pred = jnp.pad(pred, ((0, 0), (0, 0), (0, pad)))
        lab = jnp.pad(lab, ((0, 0), (0, pad)), constant_values=IGNORE_INDEX)
        hw += pad
    hw_rows = hw // LANES
    r = min(block_rows, hw_rows)             # up to 512*128 = 64K pixels / step
    num_t = pl.cdiv(hw_rows, r)

    pred4 = pred.reshape(n, c, hw_rows, LANES)   # free views, no data movement
    lab3 = lab.reshape(n, hw_rows, LANES)

    out = pl.pallas_call(
        functools.partial(_seg_ce_kernel, hw_rows=hw_rows),
        out_shape=jax.ShapeDtypeStruct((n, 2, c, LANES), jnp.float32),
        grid_spec=pltpu.PrefetchScalarGridSpec(
            num_scalar_prefetch=0,
            grid=(n, num_t),                 # batch parallel, pixel tiles arbitrary
            in_specs=[
                pl.BlockSpec((pl.Squeezed(), c, r, LANES),
                             lambda b, i: (b, 0, i, 0)),
                pl.BlockSpec((pl.Squeezed(), r, LANES),
                             lambda b, i: (b, i, 0)),
            ],
            out_specs=pl.BlockSpec((1, 2, c, LANES), lambda b, i: (b, 0, 0, 0)),
            scratch_shapes=[pltpu.VMEM((2, c, r, LANES), jnp.float32)],
        ),
        compiler_params=pltpu.CompilerParams(
            dimension_semantics=("parallel", "arbitrary")),
    )(pred4, lab3)

    # Tiny JAX epilogue: (N, 2, C, 128) per-lane partials -> per-class totals.
    s_c = jnp.sum(out[:, 0], axis=(0, 2))    # (C,) summed per-pixel NLL
    n_c = jnp.sum(out[:, 1], axis=(0, 2))    # (C,) valid pixel counts

    if loss_type == "ce":
        weight = jnp.ones((c,), jnp.float32)
    else:                                    # 'wt_ce' (module default)
        fg_cnt = n_c[fg_idx]
        bg_cnt = jnp.sum(n_c) - fg_cnt       # excludes ignore_index, as in torch
        # NOTE: matches the torch module exactly; fg_cnt==0 -> inf/NaN there too.
        weight = jnp.ones((c,), jnp.float32).at[fg_idx].set(bg_cnt / fg_cnt)

    # nn.CrossEntropyLoss(weight, ignore_index, reduction='mean'):
    #   sum_i w_{y_i} * nll_i / sum_i w_{y_i}  over non-ignored pixels.
    return jnp.sum(weight * s_c) / jnp.sum(weight * n_c)


def _reference(pred_nchw, lab, num_cls=2, fg_idx=1):
    """Pure-JAX reference of weighted_ce_loss for sanity checking."""
    n, c, h, w = pred_nchw.shape
    logits = jnp.transpose(pred_nchw, (0, 2, 3, 1)).reshape(-1, c)
    labels = lab.reshape(-1)
    valid = labels != IGNORE_INDEX
    fg_cnt = jnp.sum(labels == fg_idx)
    bg_cnt = jnp.sum(valid) - fg_cnt
    weight = jnp.ones((num_cls,), jnp.float32).at[fg_idx].set(bg_cnt / fg_cnt)
    lse = jax.scipy.special.logsumexp(logits, axis=-1)
    labels_safe = jnp.where(valid, labels, 0)
    picked = jnp.take_along_axis(logits, labels_safe[:, None], axis=-1)[:, 0]
    per_pixel = lse - picked
    w_i = weight[labels_safe] * valid.astype(jnp.float32)
    return jnp.sum(w_i * per_pixel) / jnp.sum(w_i)


if __name__ == "__main__":
    key = jax.random.PRNGKey(0)
    k1, k2, k3 = jax.random.split(key, 3)

    # small shapes: batch=2, num_cls=2, spatial=16x16
    N, C, H, W = 2, 2, 16, 16
    prediction = jax.random.normal(k1, (N, C, H, W), dtype=jnp.float32)
    target_seg = jax.random.randint(k2, (N, H, W), 0, 2).astype(jnp.int32)
    # sprinkle some ignored (255) pixels
    ignore_mask = jax.random.uniform(k3, (N, H, W)) < 0.1
    target_seg = jnp.where(ignore_mask, IGNORE_INDEX, target_seg)

    loss = seg_loss(prediction, target_seg, num_cls=2, fg_idx=1)
    loss = jax.block_until_ready(loss)

    ref = _reference(prediction, target_seg, num_cls=2, fg_idx=1)
    assert abs(float(loss) - float(ref)) < 1e-4, (float(loss), float(ref))

    print("KERNEL_OK")
</pallas_src>

<mosaic_0001>
module attributes {stable_mosaic.version = 11 : i64} {
  func.func @_seg_ce_kernel(%arg0: i32, %arg1: i32, %arg2: memref<1x2x2x128xf32, #tpu.memory_space<vmem>>, %arg3: memref<1x2x128xi32, #tpu.memory_space<vmem>>, %arg4: memref<1x2x2x128xf32, #tpu.memory_space<vmem>>, %arg5: memref<2x2x2x128xf32, #tpu.memory_space<vmem>>) attributes {dimension_semantics = [#tpu.dimension_semantics<parallel>, #tpu.dimension_semantics<arbitrary>], iteration_bounds = array<i64: 2, 1>, scalar_prefetch = 0 : i64, scratch_operands = 1 : i64, tpu.core_type = #tpu.core_type<tc>, window_params = [{transform_indices = @transform_0, window_bounds = array<i64: 1, 2, 2, 128>}, {transform_indices = @transform_1, window_bounds = array<i64: 1, 2, 128>}, {transform_indices = @transform_2, window_bounds = array<i64: 1, 2, 2, 128>}]} {
    %c0_i32 = arith.constant 0 : i32
    %0 = arith.cmpi eq, %arg1, %c0_i32 : i32
    %1 = arith.extui %0 : i1 to i32
    %c0_i32_0 = arith.constant 0 : i32
    %2 = arith.cmpi ne, %1, %c0_i32_0 : i32
    scf.if %2 {
      %cst_45 = arith.constant 0.000000e+00 : f32
      %64 = vector.broadcast %cst_45 : f32 to vector<2x2x2x128xf32>
      %c0_46 = arith.constant 0 : index
      %c0_47 = arith.constant 0 : index
      %c0_48 = arith.constant 0 : index
      %c0_49 = arith.constant 0 : index
      %65 = vector.load %arg5[%c0_46, %c0_47, %c0_48, %c0_49] : memref<2x2x2x128xf32, #tpu.memory_space<vmem>>, vector<2x2x2x128xf32>
      tpu.vector_store %arg5[%c0_46, %c0_47, %c0_48, %c0_49], %64 {strides = array<i32>} : memref<2x2x2x128xf32, #tpu.memory_space<vmem>>, vector<2x2x2x128xf32>,
    } else {
    }
    %c0 = arith.constant 0 : index
    %c0_1 = arith.constant 0 : index
    %c0_2 = arith.constant 0 : index
    %c0_3 = arith.constant 0 : index
    %3 = vector.load %arg2[%c0, %c0_1, %c0_2, %c0_3] : memref<1x2x2x128xf32, #tpu.memory_space<vmem>>, vector<1x2x2x128xf32>
    %4 = vector.shape_cast %3 : vector<1x2x2x128xf32> to vector<2x2x128xf32>
    %c0_4 = arith.constant 0 : index
    %c0_5 = arith.constant 0 : index
    %c0_6 = arith.constant 0 : index
    %5 = vector.load %arg3[%c0_4, %c0_5, %c0_6] : memref<1x2x128xi32, #tpu.memory_space<vmem>>, vector<1x2x128xi32>
    %6 = vector.shape_cast %5 : vector<1x2x128xi32> to vector<2x128xi32>
    %7 = vector.extract_strided_slice %4 {offsets = [0, 0, 0], sizes = [1, 2, 128], strides = [1, 1, 1]} : vector<2x2x128xf32> to vector<1x2x128xf32>
    %8 = vector.shape_cast %7 : vector<1x2x128xf32> to vector<2x128xf32>
    %9 = vector.extract_strided_slice %4 {offsets = [1, 0, 0], sizes = [1, 2, 128], strides = [1, 1, 1]} : vector<2x2x128xf32> to vector<1x2x128xf32>
    %10 = vector.shape_cast %9 : vector<1x2x128xf32> to vector<2x128xf32>
    %11 = arith.maximumf %8, %10 : vector<2x128xf32>
    %12 = arith.subf %8, %10 : vector<2x128xf32>
    %13 = math.absf %12 : vector<2x128xf32>
    %cst = arith.constant 0.000000e+00 : f32
    %14 = vector.broadcast %cst : f32 to vector<2x128xf32>
    %15 = arith.subf %14, %13 : vector<2x128xf32>
    %16 = math.exp %15 : vector<2x128xf32>
    %cst_7 = arith.constant 1.000000e+00 : f32
    %17 = vector.broadcast %cst_7 : f32 to vector<2x128xf32>
    %18 = arith.addf %17, %16 : vector<2x128xf32>
    %19 = math.log %18 : vector<2x128xf32>
    %20 = arith.addf %11, %19 : vector<2x128xf32>
    %c1_i32 = arith.constant 1 : i32
    %21 = vector.broadcast %c1_i32 : i32 to vector<2x128xi32>
    %22 = arith.cmpi eq, %6, %21 : vector<2x128xi32>
    %23 = arith.select %22, %10, %8 : vector<2x128xi1>, vector<2x128xf32>
    %24 = arith.subf %20, %23 : vector<2x128xf32>
    %c0_i32_8 = arith.constant 0 : i32
    %25 = vector.broadcast %c0_i32_8 : i32 to vector<2x128xi32>
    %26 = arith.cmpi eq, %6, %25 : vector<2x128xi32>
    %c0_9 = arith.constant 0 : index
    %c0_10 = arith.constant 0 : index
    %c0_11 = arith.constant 0 : index
    %c0_12 = arith.constant 0 : index
    %27 = vector.load %arg5[%c0_9, %c0_10, %c0_11, %c0_12] : memref<2x2x2x128xf32, #tpu.memory_space<vmem>>, vector<1x1x2x128xf32>
    %28 = vector.shape_cast %27 : vector<1x1x2x128xf32> to vector<2x128xf32>
    %cst_13 = arith.constant 0.000000e+00 : f32
    %29 = vector.broadcast %cst_13 : f32 to vector<2x128xf32>
    %30 = arith.select %26, %24, %29 : vector<2x128xi1>, vector<2x128xf32>
    %31 = arith.addf %28, %30 : vector<2x128xf32>
    %c0_14 = arith.constant 0 : index
    %c0_15 = arith.constant 0 : index
    %c0_16 = arith.constant 0 : index
    %c0_17 = arith.constant 0 : index
    %32 = vector.load %arg5[%c0_14, %c0_15, %c0_16, %c0_17] : memref<2x2x2x128xf32, #tpu.memory_space<vmem>>, vector<1x1x2x128xf32>
    %33 = vector.shape_cast %32 : vector<1x1x2x128xf32> to vector<2x128xf32>
    %34 = vector.shape_cast %31 : vector<2x128xf32> to vector<1x1x2x128xf32>
    tpu.vector_store %arg5[%c0_14, %c0_15, %c0_16, %c0_17], %34 {strides = array<i32>} : memref<2x2x2x128xf32, #tpu.memory_space<vmem>>, vector<1x1x2x128xf32>,
    %c1 = arith.constant 1 : index
    %c0_18 = arith.constant 0 : index
    %c0_19 = arith.constant 0 : index
    %c0_20 = arith.constant 0 : index
    %35 = vector.load %arg5[%c1, %c0_18, %c0_19, %c0_20] : memref<2x2x2x128xf32, #tpu.memory_space<vmem>>, vector<1x1x2x128xf32>
    %36 = vector.shape_cast %35 : vector<1x1x2x128xf32> to vector<2x128xf32>
    %37 = arith.extui %26 : vector<2x128xi1> to vector<2x128xi32>
    %38 = arith.sitofp %37 : vector<2x128xi32> to vector<2x128xf32>
    %39 = arith.addf %36, %38 : vector<2x128xf32>
    %c1_21 = arith.constant 1 : index
    %c0_22 = arith.constant 0 : index
    %c0_23 = arith.constant 0 : index
    %c0_24 = arith.constant 0 : index
    %40 = vector.load %arg5[%c1_21, %c0_22, %c0_23, %c0_24] : memref<2x2x2x128xf32, #tpu.memory_space<vmem>>, vector<1x1x2x128xf32>
    %41 = vector.shape_cast %40 : vector<1x1x2x128xf32> to vector<2x128xf32>
    %42 = vector.shape_cast %39 : vector<2x128xf32> to vector<1x1x2x128xf32>
    tpu.vector_store %arg5[%c1_21, %c0_22, %c0_23, %c0_24], %42 {strides = array<i32>} : memref<2x2x2x128xf32, #tpu.memory_space<vmem>>, vector<1x1x2x128xf32>,
    %c1_i32_25 = arith.constant 1 : i32
    %43 = vector.broadcast %c1_i32_25 : i32 to vector<2x128xi32>
    %44 = arith.cmpi eq, %6, %43 : vector<2x128xi32>
    %c0_26 = arith.constant 0 : index
    %c1_27 = arith.constant 1 : index
    %c0_28 = arith.constant 0 : index
    %c0_29 = arith.constant 0 : index
    %45 = vector.load %arg5[%c0_26, %c1_27, %c0_28, %c0_29] : memref<2x2x2x128xf32, #tpu.memory_space<vmem>>, vector<1x1x2x128xf32>
    %46 = vector.shape_cast %45 : vector<1x1x2x128xf32> to vector<2x128xf32>
    %cst_30 = arith.constant 0.000000e+00 : f32
    %47 = vector.broadcast %cst_30 : f32 to vector<2x128xf32>
    %48 = arith.select %44, %24, %47 : vector<2x128xi1>, vector<2x128xf32>
    %49 = arith.addf %46, %48 : vector<2x128xf32>
    %c0_31 = arith.constant 0 : index
    %c1_32 = arith.constant 1 : index
    %c0_33 = arith.constant 0 : index
    %c0_34 = arith.constant 0 : index
    %50 = vector.load %arg5[%c0_31, %c1_32, %c0_33, %c0_34] : memref<2x2x2x128xf32, #tpu.memory_space<vmem>>, vector<1x1x2x128xf32>
    %51 = vector.shape_cast %50 : vector<1x1x2x128xf32> to vector<2x128xf32>
    %52 = vector.shape_cast %49 : vector<2x128xf32> to vector<1x1x2x128xf32>
    tpu.vector_store %arg5[%c0_31, %c1_32, %c0_33, %c0_34], %52 {strides = array<i32>} : memref<2x2x2x128xf32, #tpu.memory_space<vmem>>, vector<1x1x2x128xf32>,
    %c1_35 = arith.constant 1 : index
    %c1_36 = arith.constant 1 : index
    %c0_37 = arith.constant 0 : index
    %c0_38 = arith.constant 0 : index
    %53 = vector.load %arg5[%c1_35, %c1_36, %c0_37, %c0_38] : memref<2x2x2x128xf32, #tpu.memory_space<vmem>>, vector<1x1x2x128xf32>
    %54 = vector.shape_cast %53 : vector<1x1x2x128xf32> to vector<2x128xf32>
    %55 = arith.extui %44 : vector<2x128xi1> to vector<2x128xi32>
    %56 = arith.sitofp %55 : vector<2x128xi32> to vector<2x128xf32>
    %57 = arith.addf %54, %56 : vector<2x128xf32>
    %c1_39 = arith.constant 1 : index
    %c1_40 = arith.constant 1 : index
    %c0_41 = arith.constant 0 : index
    %c0_42 = arith.constant 0 : index
    %58 = vector.load %arg5[%c1_39, %c1_40, %c0_41, %c0_42] : memref<2x2x2x128xf32, #tpu.memory_space<vmem>>, vector<1x1x2x128xf32>
    %59 = vector.shape_cast %58 : vector<1x1x2x128xf32> to vector<2x128xf32>
    %60 = vector.shape_cast %57 : vector<2x128xf32> to vector<1x1x2x128xf32>
    tpu.vector_store %arg5[%c1_39, %c1_40, %c0_41, %c0_42], %60 {strides = array<i32>} : memref<2x2x2x128xf32, #tpu.memory_space<vmem>>, vector<1x1x2x128xf32>,
    %c0_i32_43 = arith.constant 0 : i32
    %61 = arith.cmpi eq, %arg1, %c0_i32_43 : i32
    %62 = arith.extui %61 : i1 to i32
    %c0_i32_44 = arith.constant 0 : i32
    %63 = arith.cmpi ne, %62, %c0_i32_44 : i32
    scf.if %63 {
      %c0_45 = arith.constant 0 : index
      %c0_46 = arith.constant 0 : index
      %c0_47 = arith.constant 0 : index
      %c0_48 = arith.constant 0 : index
      %64 = vector.load %arg5[%c0_45, %c0_46, %c0_47, %c0_48] : memref<2x2x2x128xf32, #tpu.memory_space<vmem>>, vector<2x2x2x128xf32>
      %cst_49 = arith.constant dense<0.000000e+00> : vector<2x2x128xf32>
      %65 = vector.multi_reduction <add>, %64, %cst_49 [2] : vector<2x2x2x128xf32> to vector<2x2x128xf32>
      %66 = vector.shape_cast %65 : vector<2x2x128xf32> to vector<1x2x2x128xf32>
      %c0_50 = arith.constant 0 : index
      %c0_51 = arith.constant 0 : index
      %c0_52 = arith.constant 0 : index
      %c0_53 = arith.constant 0 : index
      %67 = vector.load %arg4[%c0_50, %c0_51, %c0_52, %c0_53] : memref<1x2x2x128xf32, #tpu.memory_space<vmem>>, vector<1x2x2x128xf32>
      tpu.vector_store %arg4[%c0_50, %c0_51, %c0_52, %c0_53], %66 {strides = array<i32>} : memref<1x2x2x128xf32, #tpu.memory_space<vmem>>, vector<1x2x2x128xf32>,
    } else {
    }
    return
  }
  func.func @transform_0(%arg0: i32, %arg1: i32) -> (i32, i32, i32, i32) {
    %c0_i32 = arith.constant 0 : i32
    %c0_i32_0 = arith.constant 0 : i32
    %c0_i32_1 = arith.constant 0 : i32
    return %arg0, %c0_i32, %arg1, %c0_i32_0 : i32, i32, i32, i32
  }
  func.func @transform_1(%arg0: i32, %arg1: i32) -> (i32, i32, i32) {
    %c0_i32 = arith.constant 0 : i32
    %c0_i32_0 = arith.constant 0 : i32
    return %arg0, %arg1, %c0_i32 : i32, i32, i32
  }
  func.func @transform_2(%arg0: i32, %arg1: i32) -> (i32, i32, i32, i32) {
    %c0_i32 = arith.constant 0 : i32
    %c0_i32_0 = arith.constant 0 : i32
    %c0_i32_1 = arith.constant 0 : i32
    %c0_i32_2 = arith.constant 0 : i32
    return %arg0, %c0_i32, %c0_i32_0, %c0_i32_1 : i32, i32, i32, i32
  }
}

</mosaic_0001>

<llo_original>
// kernel: seg_loss.1
$region0: #{seg_loss.1}
  #allocation0 [shape = 'u32[]', space=smem, size = 0x4, offset = 0x4, fixed_abs, tag = 'smem constant byte address 0x4 - core index']
  #allocation1 [shape = 'u32[72,128]{1,0:T(1,128)}', space=vmem, size = 0x9000, scoped, tag = 'internal scratch']
  #allocation2 [shape = 'f32[2,2,2,128]{3,2,1,0:T(2,128)}', space=vmem, size = 0x1000, scoped, tag = 'scratch operand']
  %s0 = inlined_call_operand.vmem [shape: f32[2,2,2,128], index: 0, kind: input, shape index: {}]
  %s1 = inlined_call_operand.vmem [shape: s32[2,2,128], index: 1, kind: input, shape index: {}]
  %s2 = inlined_call_operand.vmem [shape: f32[2,2,2,128], index: 2, kind: output, shape index: {}]
  %s3 = sld [smem:[#allocation0]]
  $region49: #{seg_loss.1} parent=0
    _
  %s5 = ssub.s32 1, %s3
  %s6 = scalar_select 0, %s5, %s3
  loop: start=0, step=1, limit=4
  $region2: #{seg_loss.1} parent=0 // loop_pre_header
    _
  $region3: #{seg_loss.1} parent=0 // loop_header
    %s8 = sphi 0, %s12
    %p9 = scmp.ge.s32.totalorder %s8, 4
    %s15 = sphi 0, %s27
    %s16 = sphi 0, %s23
    %s17 = sphi 0, %s15
    %s18 = sphi 0, %s16
    %s19 = sphi 0, %s17
    %s20 = sphi 0, %s18
    %s32 = sphi 0, %s34
    %s35 = sphi 0, %s32
    %s36 = sphi 0, %s35
    %s52 = sphi 0, %s36
    %s60 = sphi 0, %s62
    %s63 = sphi 0, %s60
    %s64 = sphi 0, %s63
    %s80 = sphi 0, %s64
    %s86 = sphi 0, %s88
    %s89 = sphi 0, %s86
    %s90 = sphi 0, %s89
    %s106 = sphi 0, %s90
  $region4: #{seg_loss.1} parent=0 // loop_header_branch
    %11 = sbr.rel (%p9) target = $region8
  $region5: #{seg_loss.1} parent=0 // loop_body
    %s13 = ssub.s32 %s8, 1
    %s14 = ssub.s32 %s8, 2
    %s21 = sadd.s32 1, %s16
    %p22 = scmp.ge.s32.totalorder %s21, 1
    %s23 = scalar_select %p22, 0, %s21
    %s24 = sadd.s32 1, %s15
    %s25 = scalar_select %p22, %s24, %s15
    %p26 = scmp.ge.s32.totalorder %s25, 2
    %s27 = scalar_select %p26, 0, %s25
    %s28 = ssub.s32 %s15, %s27
    %s29 = ssub.s32 %s16, %s23
    %s30 = sor.u32 %s28, %s29
    %p31 = scmp.eq.s32.totalorder %s30, 0
    %s33 = sadd.s32 %s32, 1
    %s34 = scalar_select %p31, %s32, %s33
    %p37 = pneg %p31
    %p38 = scmp.eq.s32.totalorder %s8, 1
    %p39 = por %p37, %p38
    %p40 = scmp.ne.s32.totalorder %s32, %s35
    %p41 = scmp.eq.s32.totalorder %s8, 0
    %p42 = por %p40, %p41
    %p43 = scmp.ne.s32.totalorder %s32, %s35
    %p44 = scmp.eq.s32.totalorder %s13, 1
    %p45 = por %p43, %p44
    %p46 = scmp.ne.s32.totalorder %s35, %s36
    %p47 = scmp.eq.s32.totalorder %s13, 0
    %p48 = por %p46, %p47
    %p49 = scmp.ne.s32.totalorder %s35, %s36
    %p50 = scmp.eq.s32.totalorder %s14, 1
    %p51 = por %p49, %p50
    %p53 = scmp.ne.s32.totalorder %s36, %s52
    %p54 = scmp.eq.s32.totalorder %s14, 0
    %p55 = por %p53, %p54
    %s56 = ssub.s32 %s15, %s27
    %s57 = ssub.s32 %s16, %s23
    %s58 = sor.u32 %s56, %s57
    %p59 = scmp.eq.s32.totalorder %s58, 0
    %s61 = sadd.s32 %s60, 1
    %s62 = scalar_select %p59, %s60, %s61
    %p65 = pneg %p59
    %p66 = scmp.eq.s32.totalorder %s8, 1
    %p67 = por %p65, %p66
    %p68 = scmp.ne.s32.totalorder %s60, %s63
    %p69 = scmp.eq.s32.totalorder %s8, 0
    %p70 = por %p68, %p69
    %p71 = scmp.ne.s32.totalorder %s60, %s63
    %p72 = scmp.eq.s32.totalorder %s13, 1
    %p73 = por %p71, %p72
    %p74 = scmp.ne.s32.totalorder %s63, %s64
    %p75 = scmp.eq.s32.totalorder %s13, 0
    %p76 = por %p74, %p75
    %p77 = scmp.ne.s32.totalorder %s63, %s64
    %p78 = scmp.eq.s32.totalorder %s14, 1
    %p79 = por %p77, %p78
    %p81 = scmp.ne.s32.totalorder %s64, %s80
    %p82 = scmp.eq.s32.totalorder %s14, 0
    %p83 = por %p81, %p82
    %s84 = ssub.s32 %s15, %s27
    %p85 = scmp.eq.s32.totalorder %s84, 0
    %s87 = sadd.s32 %s86, 1
    %s88 = scalar_select %p85, %s86, %s87
    %p91 = pneg %p85
    %p92 = scmp.eq.s32.totalorder %s8, 1
    %p93 = por %p91, %p92
    %p94 = scmp.ne.s32.totalorder %s86, %s89
    %p95 = scmp.eq.s32.totalorder %s8, 0
    %p96 = por %p94, %p95
    %p97 = scmp.ne.s32.totalorder %s86, %s89
    %p98 = scmp.eq.s32.totalorder %s13, 1
    %p99 = por %p97, %p98
    %p100 = scmp.ne.s32.totalorder %s89, %s90
    %p101 = scmp.eq.s32.totalorder %s13, 0
    %p102 = por %p100, %p101
    %p103 = scmp.ne.s32.totalorder %s89, %s90
    %p104 = scmp.eq.s32.totalorder %s14, 1
    %p105 = por %p103, %p104
    %p107 = scmp.ne.s32.totalorder %s90, %s106
    %p108 = scmp.eq.s32.totalorder %s14, 0
    %p109 = por %p107, %p108
    %p110 = scmp.le.s32.totalorder 1, %s8
    %p111 = scmp.lt.s32.totalorder %s8, 3
    %p112 = pnand %p110, %p111
    %p113 = pneg %p112
    // Predicated region
    $region9: #{seg_loss.1} parent=5 // pred_check
      _
    $region10: #{seg_loss.1} parent=5 // pred_check_branch
      %115 = sbr.rel (%p112) target = $region12
    $region11: #{seg_loss.1} parent=5 // pred_region
      %s116 = ssub.s32 %s8, 1
    $region12: #{seg_loss.1} parent=5 // pred_fallthru
      _
    %p117 = scmp.lt.s32.totalorder %s8, 2
    // Predicated region
    $region13: #{seg_loss.1} parent=5 // pred_check
      %p118 = pneg %p117
    $region14: #{seg_loss.1} parent=5 // pred_check_branch
      %120 = sbr.rel (%p118) target = $region16
    $region15: #{seg_loss.1} parent=5 // pred_region
      // Predicated region
      $region17: #{seg_loss.1} parent=15 // pred_check
        %p121 = pneg %p42
      $region18: #{seg_loss.1} parent=15 // pred_check_branch
        %123 = sbr.rel (%p121) target = $region20
      $region19: #{seg_loss.1} parent=15 // pred_region
        %p124 = scmp.lt.s32.totalorder %s15, 1
        %s125 = scalar_select %p124, %s15, 1
        %p126 = scmp.lt.s32.totalorder %s16, 0
        %s127 = scalar_select %p126, %s16, 0
        %s128 = smul.addr %s125, 2
        %s129 = sadd.s32 %s127, %s128
        %s130 = smul.addr %s129, 2
        %s131 = scalar_lea.vmem %s0, %s130
      $region20: #{seg_loss.1} parent=15 // pred_fallthru
        _
      // Predicated region
      $region21: #{seg_loss.1} parent=15 // pred_check
        %p132 = pneg %p70
      $region22: #{seg_loss.1} parent=15 // pred_check_branch
        %134 = sbr.rel (%p132) target = $region24
      $region23: #{seg_loss.1} parent=15 // pred_region
        %p135 = scmp.lt.s32.totalorder %s15, 1
        %s136 = scalar_select %p135, %s15, 1
        %p137 = scmp.lt.s32.totalorder %s16, 0
        %s138 = scalar_select %p137, %s16, 0
        %s139 = sadd.s32 %s138, %s136
        %s140 = smul.addr %s139, 2
        %s141 = scalar_lea.vmem %s1, %s140
      $region24: #{seg_loss.1} parent=15 // pred_fallthru
        _
    $region16: #{seg_loss.1} parent=5 // pred_fallthru
      _
    %p142 = scmp.le.s32.totalorder 1, %s8
    %p143 = scmp.lt.s32.totalorder %s8, 3
    %p144 = pnand %p142, %p143
    %p145 = pneg %p144
    // Predicated region
    $region25: #{seg_loss.1} parent=5 // pred_check
      _
    $region26: #{seg_loss.1} parent=5 // pred_check_branch
      %147 = sbr.rel (%p144) target = $region28
    $region27: #{seg_loss.1} parent=5 // pred_region
      %s148 = ssub.s32 %s8, 1
      %p149 = scmp.lt.s32.totalorder %s17, 1
      %s150 = scalar_select %p149, %s17, 1
      %p151 = scmp.lt.s32.totalorder %s18, 0
      %s152 = scalar_select %p151, %s18, 0
      %s153 = smul.addr %s150, 2
      %s154 = sadd.s32 %s152, %s153
      %s155 = smul.addr %s154, 2
      %s156 = scalar_lea.vmem %s0, %s155
      %p157 = pneg %p48
      %p158 = pneg %p45
      %p159 = scmp.lt.s32.totalorder %s17, 1
      %s160 = scalar_select %p159, %s17, 1
      %p161 = scmp.lt.s32.totalorder %s18, 0
      %s162 = scalar_select %p161, %s18, 0
      %s163 = sadd.s32 %s162, %s160
      %s164 = smul.addr %s163, 2
      %s165 = scalar_lea.vmem %s1, %s164
      %p166 = pneg %p76
      %p167 = pneg %p73
      %p168 = pneg %p102
      %p169 = pneg %p99
      %p170 = scmp.lt.s32.totalorder %s17, 1
      %s171 = scalar_select %p170, %s17, 1
      %s172 = smul.addr %s171, 2
      %s173 = smul.addr %s172, 2
      %s174 = scalar_lea.vmem %s2, %s173
      %p175 = scmp.lt.s32.totalorder %s17, 1
      %s176 = scalar_select %p175, %s17, 1
      %p177 = scmp.lt.s32.totalorder %s18, 0
      %s178 = scalar_select %p177, %s18, 0
      %s179 = smul.addr %s176, 2
      %s180 = sadd.s32 %s178, %s179
      %s181 = smul.addr %s180, 2
      %s182 = scalar_lea.vmem %s0, %s181
      %p183 = scmp.lt.s32.totalorder %s17, 1
      %s184 = scalar_select %p183, %s17, 1
      %p185 = scmp.lt.s32.totalorder %s18, 0
      %s186 = scalar_select %p185, %s18, 0
      %s187 = sadd.s32 %s186, %s184
      %s188 = smul.addr %s187, 2
      %s189 = scalar_lea.vmem %s1, %s188
      %p190 = scmp.lt.s32.totalorder %s17, 1
      %s191 = scalar_select %p190, %s17, 1
      %s192 = smul.addr %s191, 2
      %s193 = smul.addr %s192, 2
      %s194 = scalar_lea.vmem %s2, %s193
      %p195 = scmp.eq.s32.totalorder %s18, 0
      // Predicated region
      $region29: #{seg_loss.1} parent=27 // pred_check
        %p196 = pneg %p195
      $region30: #{seg_loss.1} parent=27 // pred_check_branch
        %198 = sbr.rel (%p196) target = $region32
      $region31: #{seg_loss.1} parent=27 // pred_region
        %199 = vst [vmem:[#allocation2] sm:$0x3] 0.0
        %200 = vst [vmem:[#allocation2 + $0x2] sm:$0x3] 0.0
        %201 = vst [vmem:[#allocation2 + $0x4] sm:$0x3] 0.0
        %202 = vst [vmem:[#allocation2 + $0x6] sm:$0x3] 0.0
      $region32: #{seg_loss.1} parent=27 // pred_fallthru
        _
      %v203 = vld [vmem:[%s182] sm:$0x3]
      %v204 = vld [vmem:[%s182 + $0x2] sm:$0x3]
      %v205 = vld [vmem:[%s189] sm:$0x3]
      %v206 = vmax.f32 %v203, %v204
      %v207 = vsub.f32 %v203, %v204
      %v208 = vand.u32 2147483647, %v207
      %v209 = vsub.f32 0.0, %v208
      %v210 = vmul.f32 %v209, 1.442695
      %v211 = vpow.pop %v210
      %v212 = vadd.f32 %v211, 1.0
      %v213 = vlog2.pop %v212
      %v214 = vmul.f32 %v213, 0.6931472
      %v215 = vadd.f32 %v206, %v214
      %vm216 = vcmp.eq.s32.totalorder %v205, 1
      %v217 = vsel %vm216, %v204, %v203
      %v218 = vsub.f32 %v215, %v217
      %vm219 = vcmp.eq.s32.totalorder %v205, 0
      %v220 = vld [vmem:[#allocation2] sm:$0x3]
      %v221 = vsel %vm219, %v218, 0.0
      %v222 = vadd.f32 %v220, %v221
      %223 = vst [vmem:[#allocation2] sm:$0x3] %v222
      %s224 = scalar_lea.vmem [#allocation2], 4
      %v225 = vld [vmem:[%s224] sm:$0x3]
      %v226 = vsel %vm219, 1, 0
      %v227 = vcvt.s32.f32 %v226
      %v228 = vadd.f32 %v225, %v227
      %229 = vst [vmem:[%s224] sm:$0x3] %v228
      %s230 = scalar_lea.vmem [#allocation2], 2
      %v231 = vld [vmem:[%s230] sm:$0x3]
      %v232 = vsel %vm216, %v218, 0.0
      %v233 = vadd.f32 %v231, %v232
      %234 = vst [vmem:[%s230] sm:$0x3] %v233
      %s235 = scalar_lea.vmem [#allocation2], 6
      %v236 = vld [vmem:[%s235] sm:$0x3]
      %v237 = vsel %vm216, 1, 0
      %v238 = vcvt.s32.f32 %v237
      %v239 = vadd.f32 %v236, %v238
      %240 = vst [vmem:[%s235] sm:$0x3] %v239
      // Predicated region
      $region33: #{seg_loss.1} parent=27 // pred_check
        %p241 = pneg %p195
      $region34: #{seg_loss.1} parent=27 // pred_check_branch
        %243 = sbr.rel (%p241) target = $region36
      $region35: #{seg_loss.1} parent=27 // pred_region
        %v244 = vld [vmem:[#allocation2] sm:$0x3]
        %v245 = vld [vmem:[#allocation2 + $0x2] sm:$0x3]
        %v246 = vld [vmem:[#allocation2 + $0x4] sm:$0x3]
        %v247 = vld [vmem:[#allocation2 + $0x6] sm:$0x3]
        %vm248 = vcmask 1041408
        %v249 = vsel %vm248, %v244, 0.0
        %v250 = vrot.slane %v249, 4
        %v251 = vadd.f32 %v249, %v250
        %v252 = vrot.slane %v251, 2
        %v253 = vadd.f32 %v251, %v252
        %v254 = vrot.slane %v253, 1
        %v255 = vadd.f32 %v253, %v254
        %v256 = vsel %vm248, %v245, 0.0
        %v257 = vrot.slane %v256, 4
        %v258 = vadd.f32 %v256, %v257
        %v259 = vrot.slane %v258, 2
        %v260 = vadd.f32 %v258, %v259
        %v261 = vrot.slane %v260, 1
        %v262 = vadd.f32 %v260, %v261
        %v263 = vsel %vm248, %v246, 0.0
        %v264 = vrot.slane %v263, 4
        %v265 = vadd.f32 %v263, %v264
        %v266 = vrot.slane %v265, 2
        %v267 = vadd.f32 %v265, %v266
        %v268 = vrot.slane %v267, 1
        %v269 = vadd.f32 %v267, %v268
        %v270 = vsel %vm248, %v247, 0.0
        %v271 = vrot.slane %v270, 4
        %v272 = vadd.f32 %v270, %v271
        %v273 = vrot.slane %v272, 2
        %v274 = vadd.f32 %v272, %v273
        %v275 = vrot.slane %v274, 1
        %v276 = vadd.f32 %v274, %v275
        %vm281 = vcmask 1041409
        %v282 = vsel %vm281, %v262, %v255
        %v283 = vsel %vm281, %v276, %v269
        %286 = vst [vmem:[%s194] sm:$0x3] %v282
        %287 = vst [vmem:[%s194 + $0x2] sm:$0x3] %v283
      $region36: #{seg_loss.1} parent=27 // pred_fallthru
        _
      %p288 = scmp.lt.s32.totalorder %s17, 1
      %s289 = scalar_select %p288, %s17, 1
      %s290 = smul.addr %s289, 2
      %s291 = smul.addr %s290, 2
      %s292 = scalar_lea.vmem %s2, %s291
      // Predicated region
      $region37: #{seg_loss.1} parent=27 // pred_check
        %p293 = pneg %p99
      $region38: #{seg_loss.1} parent=27 // pred_check_branch
        %295 = sbr.rel (%p293) target = $region40
      $region39: #{seg_loss.1} parent=27 // pred_region
        _
      $region40: #{seg_loss.1} parent=27 // pred_fallthru
        _
    $region28: #{seg_loss.1} parent=5 // pred_fallthru
      _
    %p296 = scmp.le.s32.totalorder 2, %s8
    // Predicated region
    $region41: #{seg_loss.1} parent=5 // pred_check
      %p297 = pneg %p296
    $region42: #{seg_loss.1} parent=5 // pred_check_branch
      %299 = sbr.rel (%p297) target = $region44
    $region43: #{seg_loss.1} parent=5 // pred_region
      %s300 = ssub.s32 %s8, 2
      // Predicated region
      $region45: #{seg_loss.1} parent=43 // pred_check
        %p301 = pneg %p105
      $region46: #{seg_loss.1} parent=43 // pred_check_branch
        %303 = sbr.rel (%p301) target = $region48
      $region47: #{seg_loss.1} parent=43 // pred_region
        %p304 = scmp.lt.s32.totalorder %s19, 1
        %s305 = scalar_select %p304, %s19, 1
        %s306 = smul.addr %s305, 2
        %s307 = smul.addr %s306, 2
        %s308 = scalar_lea.vmem %s2, %s307
      $region48: #{seg_loss.1} parent=43 // pred_fallthru
        _
    $region44: #{seg_loss.1} parent=5 // pred_fallthru
      _
  $region6: #{seg_loss.1} parent=0 // loop_footer
    %s12 = sadd.s32 1, %s8
  $region7: #{seg_loss.1} parent=0 // loop_footer_branch
    %7 = sbr.rel target = $region3
  $region8: #{seg_loss.1} parent=0 // loop_exit
    _

</llo_original>
